<compile_context>
chip_gen: v6e
topology: v6e:2x2x1
jax: 0.10.0
libtpu: 0.0.40
codegen_flags: <defaults>
</compile_context>

<pallas_src>
import jax
import jax.numpy as jnp
from jax.experimental import pallas as pl
from jax.experimental.pallas import tpu as pltpu


def _round_up(x, m):
    return (x + m - 1) // m * m


def _patch_embed_kernel(x_ref, w_ref, b_ref, o_ref):
    # x_ref: (tm, Kp) bf16 patch rows
    # w_ref: (Kp, tn) bf16 flattened conv weight (transposed)
    # b_ref: (1, tn)  f32 bias
    # o_ref: (tm, tn) output
    acc = jnp.dot(x_ref[...], w_ref[...], preferred_element_type=jnp.float32)
    o_ref[...] = (acc + b_ref[...]).astype(o_ref.dtype)


def patch_embedding(x, weight, bias, patch_size, *, out_dtype=None):
    """x: (B, C, H, W) NCHW. weight: (E, C, P, P). bias: (E,). -> (B, n_patches, E)."""
    B, C, H, W = x.shape
    P = patch_size
    E = weight.shape[0]
    nH, nW = H // P, W // P
    n_patches = nH * nW
    M = B * n_patches
    K = C * P * P

    out_dtype = x.dtype if out_dtype is None else jnp.dtype(out_dtype)
    out_itemsize = jnp.dtype(out_dtype).itemsize

    # Cast to bf16 *before* the layout transform (MXU operands are bf16 anyway;
    # accumulation stays f32).
    x_bf = x.astype(jnp.bfloat16)
    w_bf = weight.astype(jnp.bfloat16)

    # Non-overlapping patch extraction; minor order (c, ph, pw) matches the
    # PyTorch Conv2d weight flattening. allow_input_fusion lets XLA fold this
    # into the Pallas input DMA where possible; otherwise we accept one bf16
    # materialization of `patches`.
    # TODO(synk): if HLO shows the transpose not fusing, move patch extraction
    # into the kernel via a (B, nH)-strip BlockSpec on the 6-D view of x.
    patches = (
        x_bf.reshape(B, C, nH, P, nW, P)
        .transpose(0, 2, 4, 1, 3, 5)
        .reshape(M, K)
    )

    # --- Tiling -------------------------------------------------------------
    Kp = _round_up(K, 128)          # lane-aligned contraction dim
    Ep = _round_up(E, 128)          # lane-dense output dim

    # Column tile: whole embed dim in one tile (grid-invariant weight) for any
    # realistic ViT width; only very wide projections split the j axis.
    if Ep <= 2048:
        tn = Ep
    else:
        tn = 512
        Ep = _round_up(Ep, tn)

    # Row tile: large MXU tile, but >= 2 programs on the parallel axis when M
    # allows (v7x megacore has 2 TensorCores).
    TM_MAX = 512
    if M >= 2 * TM_MAX:
        tm = TM_MAX
    else:
        tm = max(16, min(TM_MAX, _round_up(pl.cdiv(M, 2), 16)))

    def _tile_bytes(tm_):
        x_b = 2 * tm_ * Kp * 2                         # bf16 input, double-buffered
        w_b = (1 if Ep == tn else 2) * Kp * tn * 2     # bf16 weight
        b_b = 2 * tn * 4                               # f32 bias
        o_b = 2 * tm_ * tn * out_itemsize              # output, double-buffered
        return x_b + w_b + b_b + o_b

    VMEM_TILE_BUDGET = 12 * 1024 * 1024                # safe under v5e's 16 MiB default
    while _tile_bytes(tm) > VMEM_TILE_BUDGET and tm > 64:
        tm = max(64, _round_up(tm // 2, 16))

    vmem_limit = int(min(max(2 * _tile_bytes(tm) + (2 << 20), 16 << 20), 32 << 20))

    grid = (pl.cdiv(M, tm), Ep // tn)

    # Zero-pad only where dims aren't already lane multiples; no M padding
    # (tail row tile handled by Pallas' masked edge-block writes).
    if Kp != K:
        patches = jnp.pad(patches, ((0, 0), (0, Kp - K)))
    w2d = w_bf.reshape(E, K).T
    if Kp != K or Ep != E:
        w2d = jnp.pad(w2d, ((0, Kp - K), (0, Ep - E)))
    b1d = bias.astype(jnp.float32)
    if Ep != E:
        b1d = jnp.pad(b1d, (0, Ep - E))
    b2d = b1d.reshape(1, Ep)

    x_spec = pl.BlockSpec((tm, Kp), lambda i, j: (i, 0))
    if grid[1] == 1:
        # Grid-invariant weight/bias: single-buffer to save VMEM.
        w_spec = pl.BlockSpec((Kp, tn), lambda i, j: (0, j),
                              pipeline_mode=pl.Buffered(1))
        b_spec = pl.BlockSpec((1, tn), lambda i, j: (0, j),
                              pipeline_mode=pl.Buffered(1))
    else:
        w_spec = pl.BlockSpec((Kp, tn), lambda i, j: (0, j))
        b_spec = pl.BlockSpec((1, tn), lambda i, j: (0, j))

    cost = pl.CostEstimate(
        flops=2 * M * K * E,
        transcendentals=0,
        bytes_accessed=M * Kp * 2 + Kp * Ep * 2 + Ep * 4 + M * Ep * out_itemsize,
    )

    out = pl.pallas_call(
        _patch_embed_kernel,
        out_shape=jax.ShapeDtypeStruct((M, Ep), out_dtype),
        grid_spec=pltpu.PrefetchScalarGridSpec(
            num_scalar_prefetch=0,
            grid=grid,
            in_specs=[x_spec, w_spec, b_spec],
            out_specs=pl.BlockSpec((tm, tn), lambda i, j: (i, j)),
        ),
        compiler_params=pltpu.CompilerParams(
            dimension_semantics=("parallel", "parallel"),
            allow_input_fusion=[True, True, True],
            vmem_limit_bytes=vmem_limit,
        ),
        cost_estimate=cost,
    )(patches, w2d, b2d)

    if Ep != E:
        out = out[:, :E]
    return out.reshape(B, n_patches, E)


if __name__ == "__main__":
    # Small, self-consistent config: img_size=16, patch_size=4, in_channels=4, embed_dim=32
    B, C, H, W = 2, 4, 16, 16
    P = 4
    E = 32
    n_patches = (H // P) * (W // P)  # 16

    key = jax.random.PRNGKey(0)
    kx, kw, kb = jax.random.split(key, 3)

    x = jax.random.normal(kx, (B, C, H, W), dtype=jnp.float32)
    # Deterministic, Conv2d-like init (uniform with fan_in scaling).
    fan_in = C * P * P
    bound = 1.0 / (fan_in ** 0.5)
    weight = jax.random.uniform(kw, (E, C, P, P), jnp.float32, -bound, bound)
    bias = jax.random.uniform(kb, (E,), jnp.float32, -bound, bound)

    out = jax.jit(lambda a, w, b: patch_embedding(a, w, b, P))(x, weight, bias)
    out = jax.block_until_ready(out)

    # Reference (plain JAX, f32): same patch extraction + einsum + bias.
    ref_patches = (
        x.reshape(B, C, H // P, P, W // P, P)
        .transpose(0, 2, 4, 1, 3, 5)
        .reshape(B, n_patches, C * P * P)
    )
    ref = jnp.einsum("bnk,ek->bne", ref_patches, weight.reshape(E, -1)) + bias

    assert out.shape == (B, n_patches, E), out.shape
    # bf16 matmul operands with f32 accumulation -> loose-ish tolerance vs f32 ref.
    assert jnp.allclose(out, ref, atol=5e-2, rtol=5e-2), float(jnp.max(jnp.abs(out - ref)))
    print("KERNEL_OK")
</pallas_src>

<mosaic_0001>
module attributes {stable_mosaic.version = 11 : i64} {
  func.func @_patch_embed_kernel(%arg0: i32, %arg1: i32, %arg2: memref<16x128xbf16, #tpu.memory_space<vmem>>, %arg3: memref<128x128xbf16, #tpu.memory_space<vmem>>, %arg4: memref<1x128xf32, #tpu.memory_space<vmem>>, %arg5: memref<16x128xf32, #tpu.memory_space<vmem>>) attributes {dimension_semantics = [#tpu.dimension_semantics<parallel>, #tpu.dimension_semantics<parallel>], iteration_bounds = array<i64: 2, 1>, scalar_prefetch = 0 : i64, scratch_operands = 0 : i64, tpu.core_type = #tpu.core_type<tc>, window_params = [{transform_indices = @transform_0, window_bounds = array<i64: 16, 128>}, {pipeline_mode = #tpu.pipeline_mode<synchronous>, transform_indices = @transform_1, window_bounds = array<i64: 128, 128>}, {pipeline_mode = #tpu.pipeline_mode<synchronous>, transform_indices = @transform_2, window_bounds = array<i64: 1, 128>}, {transform_indices = @transform_3, window_bounds = array<i64: 16, 128>}]} {
    %c0 = arith.constant 0 : index
    %c0_0 = arith.constant 0 : index
    %0 = vector.load %arg2[%c0, %c0_0] : memref<16x128xbf16, #tpu.memory_space<vmem>>, vector<16x128xbf16>
    %c0_1 = arith.constant 0 : index
    %c0_2 = arith.constant 0 : index
    %1 = vector.load %arg3[%c0_1, %c0_2] : memref<128x128xbf16, #tpu.memory_space<vmem>>, vector<128x128xbf16>
    %cst = arith.constant dense<0.000000e+00> : vector<16x128xf32>
    %2 = tpu.matmul %0, %1, %cst {dimension_numbers = #tpu.dot_dimension_numbers<[1], [0], [0], [1], [0, 0, 1, 1], [], []>} : vector<16x128xbf16>, vector<128x128xbf16>, vector<16x128xf32> -> vector<16x128xf32>
    %c0_3 = arith.constant 0 : index
    %c0_4 = arith.constant 0 : index
    %3 = vector.load %arg4[%c0_3, %c0_4] : memref<1x128xf32, #tpu.memory_space<vmem>>, vector<1x128xf32>
    %4 = vector.broadcast %3 : vector<1x128xf32> to vector<16x128xf32>
    %5 = arith.addf %2, %4 : vector<16x128xf32>
    %c0_5 = arith.constant 0 : index
    %c0_6 = arith.constant 0 : index
    %6 = vector.load %arg5[%c0_5, %c0_6] : memref<16x128xf32, #tpu.memory_space<vmem>>, vector<16x128xf32>
    tpu.vector_store %arg5[%c0_5, %c0_6], %5 {strides = array<i32>} : memref<16x128xf32, #tpu.memory_space<vmem>>, vector<16x128xf32>,
    return
  }
  func.func @transform_0(%arg0: i32, %arg1: i32) -> (i32, i32) {
    %c0_i32 = arith.constant 0 : i32
    %c0_i32_0 = arith.constant 0 : i32
    return %arg0, %c0_i32 : i32, i32
  }
  func.func @transform_1(%arg0: i32, %arg1: i32) -> (i32, i32) {
    %c0_i32 = arith.constant 0 : i32
    %c0_i32_0 = arith.constant 0 : i32
    return %c0_i32, %arg1 : i32, i32
  }
  func.func @transform_2(%arg0: i32, %arg1: i32) -> (i32, i32) {
    %c0_i32 = arith.constant 0 : i32
    %c0_i32_0 = arith.constant 0 : i32
    return %c0_i32, %arg1 : i32, i32
  }
  func.func @transform_3(%arg0: i32, %arg1: i32) -> (i32, i32) {
    %c0_i32 = arith.constant 0 : i32
    return %arg0, %arg1 : i32, i32
  }
}

</mosaic_0001>

<llo_original>
// kernel: _lambda_.2
$region0: #{_lambda_.2}
  #allocation0 [shape = 'u32[]', space=smem, size = 0x4, offset = 0x4, fixed_abs, tag = 'smem constant byte address 0x4 - core index']
  #allocation1 [shape = 'u32[144,128]{1,0:T(1,128)}', space=vmem, size = 0x12000, scoped, tag = 'internal scratch']
  #allocation2 [shape = 'u32[2048]{0}', space=vmem, size = 0x2000, scoped, tag = 'scoped memory for _lambda_.2']
  #allocation3 [shape = 'u32[2048]{0}', space=vmem, size = 0x2000, scoped, tag = 'scoped memory for _lambda_.2']
  #allocation4 [shape = 'u32[2048]{0}', space=vmem, size = 0x2000, scoped, tag = 'scoped memory for _lambda_.2']
  #allocation5 [shape = 'u32[2048]{0}', space=vmem, size = 0x2000, scoped, tag = 'scoped memory for _lambda_.2']
  #allocation6 [shape = 'u32[2048]{0}', space=vmem, size = 0x2000, scoped, tag = 'scoped memory for _lambda_.2']
  #allocation7 [shape = 'u32[2048]{0}', space=vmem, size = 0x2000, scoped, tag = 'scoped memory for _lambda_.2']
  #allocation8 [shape = 'u32[2048]{0}', space=vmem, size = 0x2000, scoped, tag = 'scoped memory for _lambda_.2']
  #allocation9 [shape = 'u32[2048]{0}', space=vmem, size = 0x2000, scoped, tag = 'scoped memory for _lambda_.2']
  #allocation10 [shape = 'u32[2048]{0}', space=vmem, size = 0x2000, scoped, tag = 'scoped memory for _lambda_.2']
  #allocation11 [shape = 'u32[2048]{0}', space=vmem, size = 0x2000, scoped, tag = 'scoped memory for _lambda_.2']
  #allocation12 [shape = 'u32[2048]{0}', space=vmem, size = 0x2000, scoped, tag = 'scoped memory for _lambda_.2']
  #allocation13 [shape = 'u32[2048]{0}', space=vmem, size = 0x2000, scoped, tag = 'scoped memory for _lambda_.2']
  #allocation14 [shape = 'u32[2048]{0}', space=vmem, size = 0x2000, scoped, tag = 'scoped memory for _lambda_.2']
  #allocation15 [shape = 'u32[2048]{0}', space=vmem, size = 0x2000, scoped, tag = 'scoped memory for _lambda_.2']
  #allocation16 [shape = 'u32[2048]{0}', space=vmem, size = 0x2000, scoped, tag = 'scoped memory for _lambda_.2']
  %s0 = inlined_call_operand.vmem [shape: bf16[64,32], index: 0, kind: input, shape index: {}]
  %s1 = inlined_call_operand.<no memory space> [shape: bf16[], index: 1, kind: input, shape index: {}]
  %s2 = inlined_call_operand.vmem [shape: bf16[32,64], index: 2, kind: input, shape index: {}]
  %s3 = inlined_call_operand.vmem [shape: f32[32], index: 3, kind: input, shape index: {}]
  %s4 = inlined_call_operand.<no memory space> [shape: f32[], index: 4, kind: input, shape index: {}]
  %s5 = inlined_call_operand.hbm [shape: f32[32,128], index: 5, kind: output, shape index: {}]
  %s6 = sld [smem:[#allocation0]]
  $region45: #{_lambda_.2} parent=0
    _
  %s8 = ssub.s32 1, %s6
  %s9 = scalar_select 0, %s8, %s6
  %v10 = vstv %s1
  %v11 = vunpack.i.l.bf16 %v10
  %v13 = vunpack.i.h.bf16 %v10
  %v15 = vstv %s1
  %v16 = vunpack.i.l.bf16 %v15
  %v18 = vunpack.i.h.bf16 %v15
  %v20 = vstv %s4
  $region1: #{_lambda_.2} parent=0
    #allocation17 [shape = 'u8[16384]{0}', space=vmem, size = 0x4000, scoped, tag = 'output window, operand 0']
    #allocation18 [shape = 's32[2]{0}', space=sflag, size = 0x8, scoped, tag = 'scoped memory for _lambda_.2']
    %21 = vsyncpa [#allocation18], 0
    %s22 = scalar_lea.sflag [#allocation18], 1
    %23 = vsyncpa %s22, 0
    loop: start=0, step=1, limit=4
    $region2: #{_lambda_.2} parent=1 // loop_pre_header
      _
    $region3: #{_lambda_.2} parent=1 // loop_header
      %s25 = sphi 0, %s29
      %p26 = scmp.ge.s32.totalorder %s25, 4
      %s32 = sphi 0, %s44
      %s33 = sphi 0, %s40
      %s34 = sphi 0, %s32
      %s35 = sphi 0, %s33
      %s36 = sphi 0, %s34
      %s37 = sphi 0, %s35
      %s47 = sphi 0, %s49
      %s50 = sphi 0, %s47
      %s51 = sphi 0, %s50
      %s67 = sphi 0, %s51
      %s73 = sphi 0, %s75
      %s76 = sphi 0, %s73
      %s77 = sphi 0, %s76
      %s93 = sphi 0, %s77
      %s97 = sphi 0, %s97
      %s99 = sphi 0, %s97
      %s100 = sphi 0, %s99
      %s114 = sphi 0, %s100
      %s122 = sphi 0, %s124
      %s125 = sphi 0, %s122
      %s126 = sphi 0, %s125
      %s142 = sphi 0, %s126
    $region4: #{_lambda_.2} parent=1 // loop_header_branch
      %28 = sbr.rel (%p26) target = $region8
    $region5: #{_lambda_.2} parent=1 // loop_body
      %s30 = ssub.s32 %s25, 1
      %s31 = ssub.s32 %s25, 2
      %s38 = sadd.s32 1, %s33
      %p39 = scmp.ge.s32.totalorder %s38, 1
      %s40 = scalar_select %p39, 0, %s38
      %s41 = sadd.s32 1, %s32
      %s42 = scalar_select %p39, %s41, %s32
      %p43 = scmp.ge.s32.totalorder %s42, 2
      %s44 = scalar_select %p43, 0, %s42
      %s45 = ssub.s32 %s32, %s44
      %p46 = scmp.eq.s32.totalorder %s45, 0
      %s48 = sadd.s32 %s47, 1
      %s49 = scalar_select %p46, %s47, %s48
      %p52 = pneg %p46
      %p53 = scmp.eq.s32.totalorder %s25, 1
      %p54 = por %p52, %p53
      %p55 = scmp.ne.s32.totalorder %s47, %s50
      %p56 = scmp.eq.s32.totalorder %s25, 0
      %p57 = por %p55, %p56
      %p58 = scmp.ne.s32.totalorder %s47, %s50
      %p59 = scmp.eq.s32.totalorder %s30, 1
      %p60 = por %p58, %p59
      %p61 = scmp.ne.s32.totalorder %s50, %s51
      %p62 = scmp.eq.s32.totalorder %s30, 0
      %p63 = por %p61, %p62
      %p64 = scmp.ne.s32.totalorder %s50, %s51
      %p65 = scmp.eq.s32.totalorder %s31, 1
      %p66 = por %p64, %p65
      %p68 = scmp.ne.s32.totalorder %s51, %s67
      %p69 = scmp.eq.s32.totalorder %s31, 0
      %p70 = por %p68, %p69
      %s71 = ssub.s32 %s33, %s40
      %p72 = scmp.eq.s32.totalorder %s71, 0
      %s74 = sadd.s32 %s73, 1
      %s75 = scalar_select %p72, %s73, %s74
      %p78 = pneg %p72
      %p79 = scmp.eq.s32.totalorder %s25, 1
      %p80 = por %p78, %p79
      %p81 = scmp.ne.s32.totalorder %s73, %s76
      %p82 = scmp.eq.s32.totalorder %s25, 0
      %p83 = por %p81, %p82
      %p84 = scmp.ne.s32.totalorder %s73, %s76
      %p85 = scmp.eq.s32.totalorder %s30, 1
      %p86 = por %p84, %p85
      %p87 = scmp.ne.s32.totalorder %s76, %s77
      %p88 = scmp.eq.s32.totalorder %s30, 0
      %p89 = por %p87, %p88
      %p90 = scmp.ne.s32.totalorder %s76, %s77
      %p91 = scmp.eq.s32.totalorder %s31, 1
      %p92 = por %p90, %p91
      %p94 = scmp.ne.s32.totalorder %s77, %s93
      %p95 = scmp.eq.s32.totalorder %s31, 0
      %p96 = por %p94, %p95
      %s98 = sadd.s32 %s97, 1
      %p101 = scmp.eq.s32.totalorder %s25, 1
      %p102 = scmp.ne.s32.totalorder %s97, %s99
      %p103 = scmp.eq.s32.totalorder %s25, 0
      %p104 = por %p102, %p103
      %p105 = scmp.ne.s32.totalorder %s97, %s99
      %p106 = scmp.eq.s32.totalorder %s30, 1
      %p107 = por %p105, %p106
      %p108 = scmp.ne.s32.totalorder %s99, %s100
      %p109 = scmp.eq.s32.totalorder %s30, 0
      %p110 = por %p108, %p109
      %p111 = scmp.ne.s32.totalorder %s99, %s100
      %p112 = scmp.eq.s32.totalorder %s31, 1
      %p113 = por %p111, %p112
      %p115 = scmp.ne.s32.totalorder %s100, %s114
      %p116 = scmp.eq.s32.totalorder %s31, 0
      %p117 = por %p115, %p116
      %s118 = ssub.s32 %s32, %s44
      %s119 = ssub.s32 %s33, %s40
      %s120 = sor.u32 %s118, %s119
      %p121 = scmp.eq.s32.totalorder %s120, 0
      %s123 = sadd.s32 %s122, 1
      %s124 = scalar_select %p121, %s122, %s123
      %p127 = pneg %p121
      %p128 = scmp.eq.s32.totalorder %s25, 1
      %p129 = por %p127, %p128
      %p130 = scmp.ne.s32.totalorder %s122, %s125
      %p131 = scmp.eq.s32.totalorder %s25, 0
      %p132 = por %p130, %p131
      %p133 = scmp.ne.s32.totalorder %s122, %s125
      %p134 = scmp.eq.s32.totalorder %s30, 1
      %p135 = por %p133, %p134
      %p136 = scmp.ne.s32.totalorder %s125, %s126
      %p137 = scmp.eq.s32.totalorder %s30, 0
      %p138 = por %p136, %p137
      %p139 = scmp.ne.s32.totalorder %s125, %s126
      %p140 = scmp.eq.s32.totalorder %s31, 1
      %p141 = por %p139, %p140
      %p143 = scmp.ne.s32.totalorder %s126, %s142
      %p144 = scmp.eq.s32.totalorder %s31, 0
      %p145 = por %p143, %p144
      %p146 = scmp.le.s32.totalorder 1, %s25
      %p147 = scmp.lt.s32.totalorder %s25, 3
      %p148 = pnand %p146, %p147
      %p149 = pneg %p148
      // Predicated region
      $region9: #{_lambda_.2} parent=5 // pred_check
        _
      $region10: #{_lambda_.2} parent=5 // pred_check_branch
        %151 = sbr.rel (%p148) target = $region12
      $region11: #{_lambda_.2} parent=5 // pred_region
        %s152 = ssub.s32 %s25, 1
        // Predicated region
        $region13: #{_lambda_.2} parent=11 // pred_check
          %p153 = pneg %p89
        $region14: #{_lambda_.2} parent=11 // pred_check_branch
          %155 = sbr.rel (%p153) target = $region16
        $region15: #{_lambda_.2} parent=11 // pred_region
          %s156 = ssub.s32 1, %s35
          %s157 = smul.u32 512, %s156
          %p158 = scmp.lt.s32.totalorder %s35, 0
          %s159 = scalar_select %p158, %s35, 0
          %s160 = smul.addr %s159, 4
          %s161 = scalar_lea.vmem %s0, %s160
          %s162 = ssub.s32 1, %s35
          %s163 = smul.u32 512, %s162
        $region16: #{_lambda_.2} parent=11 // pred_fallthru
          _
        // Predicated region
        $region17: #{_lambda_.2} parent=11 // pred_check
          %p164 = pneg %p110
        $region18: #{_lambda_.2} parent=11 // pred_check_branch
          %166 = sbr.rel (%p164) target = $region20
        $region19: #{_lambda_.2} parent=11 // pred_region
          _
        $region20: #{_lambda_.2} parent=11 // pred_fallthru
          _
      $region12: #{_lambda_.2} parent=5 // pred_fallthru
        _
      %p167 = scmp.lt.s32.totalorder %s25, 2
      // Predicated region
      $region21: #{_lambda_.2} parent=5 // pred_check
        %p168 = pneg %p167
      $region22: #{_lambda_.2} parent=5 // pred_check_branch
        %170 = sbr.rel (%p168) target = $region24
      $region23: #{_lambda_.2} parent=5 // pred_region
        // Predicated region
        $region25: #{_lambda_.2} parent=23 // pred_check
          %p171 = pneg %p57
        $region26: #{_lambda_.2} parent=23 // pred_check_branch
          %173 = sbr.rel (%p171) target = $region28
        $region27: #{_lambda_.2} parent=23 // pred_region
          %s174 = smul.u32 2, %s32
          %p175 = scmp.lt.s32.totalorder %s174, 3
          %s176 = scalar_select %p175, %s174, 3
          %s177 = smul.addr %s176, 4
          %s178 = scalar_lea.vmem %s2, %s177
          %s179 = smul.u32 2, %s32
        $region28: #{_lambda_.2} parent=23 // pred_fallthru
          _
      $region24: #{_lambda_.2} parent=5 // pred_fallthru
        _
      %p180 = scmp.le.s32.totalorder 1, %s25
      %p181 = scmp.lt.s32.totalorder %s25, 3
      %p182 = pnand %p180, %p181
      %p183 = pneg %p182
      // Predicated region
      $region29: #{_lambda_.2} parent=5 // pred_check
        _
      $region30: #{_lambda_.2} parent=5 // pred_check_branch
        %185 = sbr.rel (%p182) target = $region32
      $region31: #{_lambda_.2} parent=5 // pred_region
        #allocation19 [shape = 'u8[4096]{0}', space=vmem, size = 0x1000, dematerialized = true, scoped, tag = 'FusionAdapter Buffer %fusion.2 = bf16[32,128]{1,0:T(8,128)(2,1)} fusion(%param_2.3, %param_1.5), kind=kLoop, calls=%fused_computation.3.clone, metadata={op_name="jit(<lambda>)/jit(_pad)/pad" stack_frame_id=14}']
        #allocation20 [shape = 'u8[32768]{0}', space=vmem, size = 0x8000, dematerialized = true, scoped, tag = 'FusionAdapter Buffer %fusion.1 = bf16[128,128]{1,0:T(8,128)(2,1)} fusion(%param_0.6, %param_1.5), kind=kLoop, calls=%fused_computation.2.clone, metadata={op_name="jit(<lambda>)/jit(_pad)/pad" stack_frame_id=16}']
        #allocation21 [shape = 'u8[512]{0}', space=vmem, size = 0x400, dematerialized = true, scoped, tag = 'FusionAdapter Buffer %fusion.3 = f32[1,128]{1,0:T(1,128)} fusion(%param_3.3, %param_4), kind=kLoop, calls=%fused_computation.4.clone, metadata={op_name="jit(<lambda>)/reshape" stack_frame_id=18}']
        %s186 = ssub.s32 %s25, 1
        %s187 = smul.u32 2, %s34
        %p188 = scmp.lt.s32.totalorder %s187, 3
        %s189 = scalar_select %p188, %s187, 3
        %s190 = smul.addr %s189, 4
        %s191 = scalar_lea.vmem %s2, %s190
        %p192 = pneg %p63
        %p193 = pneg %p60
        %s194 = ssub.s32 1, %s35
        %s195 = smul.u32 512, %s194
        %p196 = scmp.lt.s32.totalorder %s35, 0
        %s197 = scalar_select %p196, %s35, 0
        %s198 = smul.addr %s197, 4
        %s199 = scalar_lea.vmem %s0, %s198
        %p200 = pneg %p89
        %p201 = pneg %p86
        %p202 = pneg %p110
        %p203 = pneg %p107
        %p204 = pneg %p138
        %p205 = pneg %p135
        %s206 = sand.u32 %s125, 1
        %s207 = scalar_lea.sflag [#allocation18], %s206
        %s208 = sand.u32 %s125, 1
        %s209 = smul.addr %s208, 16
        %s210 = scalar_lea.vmem [#allocation17], %s209
        %s211 = smul.u32 2, %s34
        %p212 = scmp.lt.s32.totalorder %s211, 3
        %s213 = scalar_select %p212, %s211, 3
        %s214 = smul.addr %s213, 4
        %s215 = scalar_lea.vmem %s2, %s214
        %s216 = smul.u32 2, %s34
        %s217 = ssub.s32 1, %s35
        %s218 = smul.u32 512, %s217
        %p219 = scmp.lt.s32.totalorder %s35, 0
        %s220 = scalar_select %p219, %s35, 0
        %s221 = smul.addr %s220, 4
        %s222 = scalar_lea.vmem %s0, %s221
        %s223 = ssub.s32 1, %s35
        %s224 = smul.u32 512, %s223
        %s225 = smul.u32 2, %s34
        %s227 = sor.u32 255, 127
        %s228 = sand.u32 %s227, 85
        %s229 = sshrl.u32 %s228, 1
        %s230 = sor.u32 %s228, %s229
        %s231 = sand.u32 51, %s230
        %s232 = sshrl.u32 %s231, 2
        %s233 = sor.u32 %s231, %s232
        %s234 = sand.u32 15, %s233
        %v235 = vld [vmem:[%s215] sm:%s234]
        %v236 = vunpack.c.l.bf16 %v235
        %v237 = vunpack.c.h.bf16 %v235
        %v238 = vlaneseq
        %v239 = vand.u32 %v238, 127
        %vm241 = vcmp.lt.s32.totalorder %v239, 64
        %v242 = vsel %vm241, %v236, %v11
        %v243 = vpack.c.bf16 0.0, %v242
        %s245 = ssub.s32 16, 1
        %246 = vst [vmem:[#allocation19] sm:%s245] %v243
        %s247 = scalar_lea.vmem %s215, 4
        %s249 = sor.u32 255, 127
        %s250 = sand.u32 %s249, 85
        %s251 = sshrl.u32 %s250, 1
        %s252 = sor.u32 %s250, %s251
        %s253 = sand.u32 51, %s252
        %s254 = sshrl.u32 %s253, 2
        %s255 = sor.u32 %s253, %s254
        %s256 = sand.u32 15, %s255
        %v257 = vld [vmem:[%s247] sm:%s256]
        %v258 = vunpack.c.l.bf16 %v257
        %v259 = vunpack.c.h.bf16 %v257
        %v260 = vlaneseq
        %v261 = vand.u32 %v260, 127
        %vm263 = vcmp.lt.s32.totalorder %v261, 64
        %v264 = vsel %vm263, %v258, %v11
        %s265 = scalar_lea.vmem [#allocation19], 4
        %v266 = vpack.c.bf16 0.0, %v264
        %s268 = ssub.s32 16, 1
        %269 = vst [vmem:[%s265] sm:%s268] %v266
        %s270 = ssub.s32 0, %s35
        %s271 = sor.u32 7, %s270
        %p272 = scmp.lt.s32.totalorder %s271, 0
        %s273 = scalar_select %p272, 0, 255
        %s274 = sshrl.u32 %s273, 1
        %s275 = sor.u32 %s273, %s274
        %s276 = sand.u32 %s275, 85
        %s277 = sshrl.u32 %s276, 1
        %s278 = sor.u32 %s276, %s277
        %s279 = sand.u32 51, %s278
        %s280 = sshrl.u32 %s279, 2
        %s281 = sor.u32 %s279, %s280
        %s282 = sand.u32 15, %s281
        %v283 = vld [vmem:[%s222] sm:%s282]
        %v284 = vunpack.c.l.bf16 %v283
        %v285 = vunpack.c.h.bf16 %v283
        %s286 = ssub.s32 0, %s35
        %s287 = sor.u32 7, %s286
        %v288 = vstv %s287
        %vm289 = vcmp.lt.s32.totalorder %v288, 0
        %v290 = vsel %vm289, %v16, %v284
        %s291 = smul.addr %s35, 128
        %v292 = vlaneseq
        %v293 = vand.u32 %v292, 127
        %v294 = vstv %s291
        %v295 = vadd.s32 %v293, %v294
        %vm296 = vcmp.lt.s32.totalorder %v295, 32
        %v297 = vsel %vm296, %v290, %v16
        %v298 = vpack.c.bf16 0.0, %v297
        %s300 = ssub.s32 16, 1
        %301 = vst [vmem:[#allocation20] sm:%s300] %v298
        %s302 = scalar_lea.vmem %s222, 4
        %s303 = ssub.s32 0, %s35
        %s304 = sor.u32 6, %s303
        %p305 = scmp.lt.s32.totalorder %s304, 0
        %s306 = scalar_select %p305, 0, 255
        %s307 = sshrl.u32 %s306, 1
        %s308 = sor.u32 %s306, %s307
        %s309 = sand.u32 %s308, 85
        %s310 = sshrl.u32 %s309, 1
        %s311 = sor.u32 %s309, %s310
        %s312 = sand.u32 51, %s311
        %s313 = sshrl.u32 %s312, 2
        %s314 = sor.u32 %s312, %s313
        %s315 = sand.u32 15, %s314
        %v316 = vld [vmem:[%s302] sm:%s315]
        %v317 = vunpack.c.l.bf16 %v316
        %v318 = vunpack.c.h.bf16 %v316
        %s319 = ssub.s32 0, %s35
        %s320 = sor.u32 6, %s319
        %v321 = vstv %s320
        %vm322 = vcmp.lt.s32.totalorder %v321, 0
        %v323 = vsel %vm322, %v16, %v317
        %s324 = smul.addr %s35, 128
        %v325 = vlaneseq
        %v326 = vand.u32 %v325, 127
        %v327 = vstv %s324
        %v328 = vadd.s32 %v326, %v327
        %vm329 = vcmp.lt.s32.totalorder %v328, 32
        %v330 = vsel %vm329, %v323, %v16
        %s331 = scalar_lea.vmem [#allocation20], 4
        %v332 = vpack.c.bf16 0.0, %v330
        %s334 = ssub.s32 16, 1
        %335 = vst [vmem:[%s331] sm:%s334] %v332
        %s336 = scalar_lea.vmem %s222, 8
        %s337 = ssub.s32 0, %s35
        %s338 = sor.u32 5, %s337
        %p339 = scmp.lt.s32.totalorder %s338, 0
        %s340 = scalar_select %p339, 0, 255
        %s341 = sshrl.u32 %s340, 1
        %s342 = sor.u32 %s340, %s341
        %s343 = sand.u32 %s342, 85
        %s344 = sshrl.u32 %s343, 1
        %s345 = sor.u32 %s343, %s344
        %s346 = sand.u32 51, %s345
        %s347 = sshrl.u32 %s346, 2
        %s348 = sor.u32 %s346, %s347
        %s349 = sand.u32 15, %s348
        %v350 = vld [vmem:[%s336] sm:%s349]
        %v351 = vunpack.c.l.bf16 %v350
        %v352 = vunpack.c.h.bf16 %v350
        %s353 = ssub.s32 0, %s35
        %s354 = sor.u32 5, %s353
        %v355 = vstv %s354
        %vm356 = vcmp.lt.s32.totalorder %v355, 0
        %v357 = vsel %vm356, %v16, %v351
        %s358 = smul.addr %s35, 128
        %v359 = vlaneseq
        %v360 = vand.u32 %v359, 127
        %v361 = vstv %s358
        %v362 = vadd.s32 %v360, %v361
        %vm363 = vcmp.lt.s32.totalorder %v362, 32
        %v364 = vsel %vm363, %v357, %v16
        %s365 = scalar_lea.vmem [#allocation20], 8
        %v366 = vpack.c.bf16 0.0, %v364
        %s368 = ssub.s32 16, 1
        %369 = vst [vmem:[%s365] sm:%s368] %v366
        %s370 = scalar_lea.vmem %s222, 12
        %s371 = ssub.s32 0, %s35
        %s372 = sor.u32 4, %s371
        %p373 = scmp.lt.s32.totalorder %s372, 0
        %s374 = scalar_select %p373, 0, 255
        %s375 = sshrl.u32 %s374, 1
        %s376 = sor.u32 %s374, %s375
        %s377 = sand.u32 %s376, 85
        %s378 = sshrl.u32 %s377, 1
        %s379 = sor.u32 %s377, %s378
        %s380 = sand.u32 51, %s379
        %s381 = sshrl.u32 %s380, 2
        %s382 = sor.u32 %s380, %s381
        %s383 = sand.u32 15, %s382
        %v384 = vld [vmem:[%s370] sm:%s383]
        %v385 = vunpack.c.l.bf16 %v384
        %v386 = vunpack.c.h.bf16 %v384
        %s387 = ssub.s32 0, %s35
        %s388 = sor.u32 4, %s387
        %v389 = vstv %s388
        %vm390 = vcmp.lt.s32.totalorder %v389, 0
        %v391 = vsel %vm390, %v16, %v385
        %s392 = smul.addr %s35, 128
        %v393 = vlaneseq
        %v394 = vand.u32 %v393, 127
        %v395 = vstv %s392
        %v396 = vadd.s32 %v394, %v395
        %vm397 = vcmp.lt.s32.totalorder %v396, 32
        %v398 = vsel %vm397, %v391, %v16
        %s399 = scalar_lea.vmem [#allocation20], 12
        %v400 = vpack.c.bf16 0.0, %v398
        %s402 = ssub.s32 16, 1
        %403 = vst [vmem:[%s399] sm:%s402] %v400
        %s404 = scalar_lea.vmem %s222, 16
        %s405 = ssub.s32 0, %s35
        %s406 = sor.u32 3, %s405
        %p407 = scmp.lt.s32.totalorder %s406, 0
        %s408 = scalar_select %p407, 0, 255
        %s409 = sshrl.u32 %s408, 1
        %s410 = sor.u32 %s408, %s409
        %s411 = sand.u32 %s410, 85
        %s412 = sshrl.u32 %s411, 1
        %s413 = sor.u32 %s411, %s412
        %s414 = sand.u32 51, %s413
        %s415 = sshrl.u32 %s414, 2
        %s416 = sor.u32 %s414, %s415
        %s417 = sand.u32 15, %s416
        %v418 = vld [vmem:[%s404] sm:%s417]
        %v419 = vunpack.c.l.bf16 %v418
        %v420 = vunpack.c.h.bf16 %v418
        %s421 = ssub.s32 0, %s35
        %s422 = sor.u32 3, %s421
        %v423 = vstv %s422
        %vm424 = vcmp.lt.s32.totalorder %v423, 0
        %v425 = vsel %vm424, %v16, %v419
        %s426 = smul.addr %s35, 128
        %v427 = vlaneseq
        %v428 = vand.u32 %v427, 127
        %v429 = vstv %s426
        %v430 = vadd.s32 %v428, %v429
        %vm431 = vcmp.lt.s32.totalorder %v430, 32
        %v432 = vsel %vm431, %v425, %v16
        %s433 = scalar_lea.vmem [#allocation20], 16
        %v434 = vpack.c.bf16 0.0, %v432
        %s436 = ssub.s32 16, 1
        %437 = vst [vmem:[%s433] sm:%s436] %v434
        %s438 = scalar_lea.vmem %s222, 20
        %s439 = ssub.s32 0, %s35
        %s440 = sor.u32 2, %s439
        %p441 = scmp.lt.s32.totalorder %s440, 0
        %s442 = scalar_select %p441, 0, 255
        %s443 = sshrl.u32 %s442, 1
        %s444 = sor.u32 %s442, %s443
        %s445 = sand.u32 %s444, 85
        %s446 = sshrl.u32 %s445, 1
        %s447 = sor.u32 %s445, %s446
        %s448 = sand.u32 51, %s447
        %s449 = sshrl.u32 %s448, 2
        %s450 = sor.u32 %s448, %s449
        %s451 = sand.u32 15, %s450
        %v452 = vld [vmem:[%s438] sm:%s451]
        %v453 = vunpack.c.l.bf16 %v452
        %v454 = vunpack.c.h.bf16 %v452
        %s455 = ssub.s32 0, %s35
        %s456 = sor.u32 2, %s455
        %v457 = vstv %s456
        %vm458 = vcmp.lt.s32.totalorder %v457, 0
        %v459 = vsel %vm458, %v16, %v453
        %s460 = smul.addr %s35, 128
        %v461 = vlaneseq
        %v462 = vand.u32 %v461, 127
        %v463 = vstv %s460
        %v464 = vadd.s32 %v462, %v463
        %vm465 = vcmp.lt.s32.totalorder %v464, 32
        %v466 = vsel %vm465, %v459, %v16
        %s467 = scalar_lea.vmem [#allocation20], 20
        %v468 = vpack.c.bf16 0.0, %v466
        %s470 = ssub.s32 16, 1
        %471 = vst [vmem:[%s467] sm:%s470] %v468
        %s472 = scalar_lea.vmem %s222, 24
        %s473 = ssub.s32 0, %s35
        %s474 = sor.u32 1, %s473
        %p475 = scmp.lt.s32.totalorder %s474, 0
        %s476 = scalar_select %p475, 0, 255
        %s477 = sshrl.u32 %s476, 1
        %s478 = sor.u32 %s476, %s477
        %s479 = sand.u32 %s478, 85
        %s480 = sshrl.u32 %s479, 1
        %s481 = sor.u32 %s479, %s480
        %s482 = sand.u32 51, %s481
        %s483 = sshrl.u32 %s482, 2
        %s484 = sor.u32 %s482, %s483
        %s485 = sand.u32 15, %s484
        %v486 = vld [vmem:[%s472] sm:%s485]
        %v487 = vunpack.c.l.bf16 %v486
        %v488 = vunpack.c.h.bf16 %v486
        %s489 = ssub.s32 0, %s35
        %s490 = sor.u32 1, %s489
        %v491 = vstv %s490
        %vm492 = vcmp.lt.s32.totalorder %v491, 0
        %v493 = vsel %vm492, %v16, %v487
        %s494 = smul.addr %s35, 128
        %v495 = vlaneseq
        %v496 = vand.u32 %v495, 127
        %v497 = vstv %s494
        %v498 = vadd.s32 %v496, %v497
        %vm499 = vcmp.lt.s32.totalorder %v498, 32
        %v500 = vsel %vm499, %v493, %v16
        %s501 = scalar_lea.vmem [#allocation20], 24
        %v502 = vpack.c.bf16 0.0, %v500
        %s504 = ssub.s32 16, 1
        %505 = vst [vmem:[%s501] sm:%s504] %v502
        %s506 = scalar_lea.vmem %s222, 28
        %s507 = ssub.s32 0, %s35
        %p508 = scmp.lt.s32.totalorder %s507, 0
        %s509 = scalar_select %p508, 0, 255
        %s510 = sshrl.u32 %s509, 1
        %s511 = sor.u32 %s509, %s510
        %s512 = sand.u32 %s511, 85
        %s513 = sshrl.u32 %s512, 1
        %s514 = sor.u32 %s512, %s513
        %s515 = sand.u32 51, %s514
        %s516 = sshrl.u32 %s515, 2
        %s517 = sor.u32 %s515, %s516
        %s518 = sand.u32 15, %s517
        %v519 = vld [vmem:[%s506] sm:%s518]
        %v520 = vunpack.c.l.bf16 %v519
        %v521 = vunpack.c.h.bf16 %v519
        %s522 = ssub.s32 0, %s35
        %v523 = vstv %s522
        %vm524 = vcmp.lt.s32.totalorder %v523, 0
        %v525 = vsel %vm524, %v16, %v520
        %s526 = smul.addr %s35, 128
        %v527 = vlaneseq
        %v528 = vand.u32 %v527, 127
        %v529 = vstv %s526
        %v530 = vadd.s32 %v528, %v529
        %vm531 = vcmp.lt.s32.totalorder %v530, 32
        %v532 = vsel %vm531, %v525, %v16
        %s533 = scalar_lea.vmem [#allocation20], 28
        %v534 = vpack.c.bf16 0.0, %v532
        %s536 = ssub.s32 16, 1
        %537 = vst [vmem:[%s533] sm:%s536] %v534
        %s538 = scalar_lea.vmem [#allocation20], 32
        %v539 = vpack.c.bf16 0.0, %v16
        %s541 = ssub.s32 16, 1
        %542 = vst [vmem:[%s538] sm:%s541] %v539
        %s543 = scalar_lea.vmem [#allocation20], 36
        %v544 = vpack.c.bf16 0.0, %v16
        %s546 = ssub.s32 16, 1
        %547 = vst [vmem:[%s543] sm:%s546] %v544
        %s548 = scalar_lea.vmem [#allocation20], 40
        %v549 = vpack.c.bf16 0.0, %v16
        %s551 = ssub.s32 16, 1
        %552 = vst [vmem:[%s548] sm:%s551] %v549
        %s553 = scalar_lea.vmem [#allocation20], 44
        %v554 = vpack.c.bf16 0.0, %v16
        %s556 = ssub.s32 16, 1
        %557 = vst [vmem:[%s553] sm:%s556] %v554
        %s558 = scalar_lea.vmem [#allocation20], 48
        %v559 = vpack.c.bf16 0.0, %v16
        %s561 = ssub.s32 16, 1
        %562 = vst [vmem:[%s558] sm:%s561] %v559
        %s563 = scalar_lea.vmem [#allocation20], 52
        %v564 = vpack.c.bf16 0.0, %v16
        %s566 = ssub.s32 16, 1
        %567 = vst [vmem:[%s563] sm:%s566] %v564
        %s568 = scalar_lea.vmem [#allocation20], 56
        %v569 = vpack.c.bf16 0.0, %v16
        %s571 = ssub.s32 16, 1
        %572 = vst [vmem:[%s568] sm:%s571] %v569
        %s573 = scalar_lea.vmem [#allocation20], 60
        %v574 = vpack.c.bf16 0.0, %v16
        %s576 = ssub.s32 16, 1
        %577 = vst [vmem:[%s573] sm:%s576] %v574
        %v578 = vld [vmem:[%s3] sm:$0x1]
        %v579 = vlaneseq
        %vm581 = vcmp.lt.s32.totalorder %v579, 32
        %v582 = vsel %vm581, %v578, %v20
        %s584 = ssub.s32 2, 1
        %585 = vst [vmem:[#allocation21] sm:%s584] %v582
        %v587 = vld [vmem:[#allocation19] sm:$0xf]
        %v588 = vld [vmem:[#allocation19 + $0x4] sm:$0xf]
        %v589 = vld [vmem:[#allocation20] sm:$0xf]
        %v590 = vld [vmem:[#allocation20 + $0x4] sm:$0xf]
        %v591 = vld [vmem:[#allocation20 + $0x8] sm:$0xf]
        %v592 = vld [vmem:[#allocation20 + $0xc] sm:$0xf]
        %v593 = vld [vmem:[#allocation20 + $0x10] sm:$0xf]
        %v594 = vld [vmem:[#allocation20 + $0x14] sm:$0xf]
        %v595 = vld [vmem:[#allocation20 + $0x18] sm:$0xf]
        %v596 = vld [vmem:[#allocation20 + $0x1c] sm:$0xf]
        %v597 = vld [vmem:[#allocation20 + $0x20] sm:$0xf]
        %v598 = vld [vmem:[#allocation20 + $0x24] sm:$0xf]
        %v599 = vld [vmem:[#allocation20 + $0x28] sm:$0xf]
        %v600 = vld [vmem:[#allocation20 + $0x2c] sm:$0xf]
        %v601 = vld [vmem:[#allocation20 + $0x30] sm:$0xf]
        %v602 = vld [vmem:[#allocation20 + $0x34] sm:$0xf]
        %v603 = vld [vmem:[#allocation20 + $0x38] sm:$0xf]
        %v604 = vld [vmem:[#allocation20 + $0x3c] sm:$0xf]
        %v605 = vld [vmem:[#allocation21] sm:$0x1]
        %v607 = vlaneseq
        %v608 = vshrl.u32 %v607, 7
        %v609 = vsub.s32 0, %v608
        %v610 = vrot.slane %v605, %v609
        %v614 = vunpack.c.l.b16 %v587
        %v615 = vunpack.c.l.b16 %v588
        %v616 = vpack.c.b16 %v615, %v614
        %v634 = vunpack.c.l.b16 %v589
        %v635 = vunpack.c.l.b16 %v590
        %v636 = vunpack.c.l.b16 %v591
        %v637 = vunpack.c.l.b16 %v592
        %v638 = vunpack.c.l.b16 %v593
        %v639 = vunpack.c.l.b16 %v594
        %v640 = vunpack.c.l.b16 %v595
        %v641 = vunpack.c.l.b16 %v596
        %v642 = vunpack.c.l.b16 %v597
        %v643 = vunpack.c.l.b16 %v598
        %v644 = vunpack.c.l.b16 %v599
        %v645 = vunpack.c.l.b16 %v600
        %v646 = vunpack.c.l.b16 %v601
        %v647 = vunpack.c.l.b16 %v602
        %v648 = vunpack.c.l.b16 %v603
        %v649 = vunpack.c.l.b16 %v604
        %v650 = vpack.c.b16 %v635, %v634
        %v651 = vpack.c.b16 %v637, %v636
        %v652 = vpack.c.b16 %v639, %v638
        %v653 = vpack.c.b16 %v641, %v640
        %v654 = vpack.c.b16 %v643, %v642
        %v655 = vpack.c.b16 %v645, %v644
        %v656 = vpack.c.b16 %v647, %v646
        %v657 = vpack.c.b16 %v649, %v648
        %666 = vmatprep.subr.bf16.mxu0 0
        %667 = vmatpush1.bf16.msra.mxu0 %v657
        %668 = vmatprep.subr.bf16.mxu0 0
        %669 = vmatpush1.bf16.msra.mxu0 %v656
        %670 = vmatprep.subr.bf16.mxu0 0
        %671 = vmatpush1.bf16.msra.mxu0 %v655
        %672 = vmatprep.subr.bf16.mxu0 0
        %673 = vmatpush1.bf16.msra.mxu0 %v654
        %674 = vmatprep.subr.bf16.mxu0 0
        %675 = vmatpush1.bf16.msra.mxu0 %v653
        %676 = vmatprep.subr.bf16.mxu0 0
        %677 = vmatpush1.bf16.msra.mxu0 %v652
        %678 = vmatprep.subr.bf16.mxu0 0
        %679 = vmatpush1.bf16.msra.mxu0 %v651
        %680 = vmatprep.subr.bf16.mxu0 0
        %681 = vmatpush1.bf16.msra.mxu0 %v650
        %682 = vmatprep.subr.bf16.mxu0 0
        %683 = vmatpush2.bf16.msra.mxu0 0
        %684 = vmatprep.subr.bf16.mxu0 0
        %685 = vmatpush2.bf16.msra.mxu0 0
        %686 = vmatprep.subr.bf16.mxu0 0
        %687 = vmatpush2.bf16.msra.mxu0 0
        %688 = vmatprep.subr.bf16.mxu0 0
        %689 = vmatpush2.bf16.msra.mxu0 0
        %690 = vmatprep.subr.bf16.mxu0 0
        %691 = vmatpush2.bf16.msra.mxu0 0
        %692 = vmatprep.subr.bf16.mxu0 0
        %693 = vmatpush2.bf16.msra.mxu0 0
        %694 = vmatprep.subr.bf16.mxu0 0
        %695 = vmatpush2.bf16.msra.mxu0 0
        %696 = vmatprep.subr.bf16.mxu0 0
        %697 = vmatpush2.bf16.msra.mxu0 0
        %698 = vmatprep.mubr.bf16.mxu0 0
        %699 = vmatmul.mubr.bf16.gmra.mxu0 %v616
        %v700 = vpop.f32.mrf.mxu0
        %v701 = vadd.f32 %v610, %v700
        %v702 = vpop.f32.mrf.mxu0
        %v703 = vpop.f32.mrf.mxu0
        %v704 = vadd.f32 %v610, %v703
        %v705 = vpop.f32.mrf.mxu0
        %706 = vdwg.mxu0
        %707 = vst [vmem:[%s210] sm:$0xff] %v701
        %708 = vst [vmem:[%s210 + $0x8] sm:$0xff] %v704
        %s709 = sand.u32 %s125, 1
        %s710 = scalar_lea.sflag [#allocation18], %s709
        %s711 = sand.u32 %s125, 1
        %s712 = smul.addr %s711, 16
        %s713 = scalar_lea.vmem [#allocation17], %s712
        // Predicated region
        $region33: #{_lambda_.2} parent=31 // pred_check
          %p714 = pneg %p135
        $region34: #{_lambda_.2} parent=31 // pred_check_branch
          %716 = sbr.rel (%p714) target = $region36
        $region35: #{_lambda_.2} parent=31 // pred_region
          %s717 = smul.u32 2, %s34
          %s719 = ssub.s32 256, 256
          %720 = vsyncadd %s710, %s719
          %s721 = sadd.s32 %s35, %s717
          %s722 = smul.addr %s721, 128
          %s723 = scalar_lea.hbm %s5, %s722
          %s724 = sshll.u32 %s713, 4
          %s725 = int_to_ptr.vmem [resolvable:$true] %s724
          %730 = dma.vmem_to_hbm [thread:$0]  %s725, 256, %s723, %s710, 128, 128, 8
        $region36: #{_lambda_.2} parent=31 // pred_fallthru
          _
      $region32: #{_lambda_.2} parent=5 // pred_fallthru
        _
      %p731 = scmp.le.s32.totalorder 2, %s25
      // Predicated region
      $region37: #{_lambda_.2} parent=5 // pred_check
        %p732 = pneg %p731
      $region38: #{_lambda_.2} parent=5 // pred_check_branch
        %734 = sbr.rel (%p732) target = $region40
      $region39: #{_lambda_.2} parent=5 // pred_region
        %s735 = ssub.s32 %s25, 2
        // Predicated region
        $region41: #{_lambda_.2} parent=39 // pred_check
          %p736 = pneg %p141
        $region42: #{_lambda_.2} parent=39 // pred_check_branch
          %738 = sbr.rel (%p736) target = $region44
        $region43: #{_lambda_.2} parent=39 // pred_region
          %s739 = sand.u32 %s126, 1
          %s740 = scalar_lea.sflag [#allocation18], %s739
          %s741 = sand.u32 %s126, 1
          %s742 = smul.addr %s741, 16
          %s743 = scalar_lea.vmem [#allocation17], %s742
          %744 = dma.done %s740, 256
        $region44: #{_lambda_.2} parent=39 // pred_fallthru
          _
      $region40: #{_lambda_.2} parent=5 // pred_fallthru
        _
    $region6: #{_lambda_.2} parent=1 // loop_footer
      %s29 = sadd.s32 1, %s25
    $region7: #{_lambda_.2} parent=1 // loop_footer_branch
      %24 = sbr.rel target = $region3
    $region8: #{_lambda_.2} parent=1 // loop_exit
      _
    %745 = vsyncpa [#allocation18], 1
    %s746 = scalar_lea.sflag [#allocation18], 1
    %747 = vsyncpa %s746, 1

</llo_original>
